<compile_context>
chip_gen: v6e
topology: v6e:2x2x1
jax: 0.10.0
libtpu: 0.0.40
codegen_flags: <defaults>
</compile_context>

<pallas_src>
import jax
import jax.numpy as jnp
from jax.experimental import pallas as pl
from jax.experimental.pallas import tpu as pltpu


_PAD_BIG = 1e30  # injected into padded feature lanes of v2 by the wrapper


def _round_up(x: int, m: int) -> int:
    return ((x + m - 1) // m) * m


def _vmem_capacity_bytes() -> int:
    try:
        return int(pltpu.get_tpu_info().vmem_capacity_bytes)
    except Exception:
        return 64 << 20  # conservative: v7x per-TensorCore VMEM


def _make_loss_kernel(temperature):
    neg_inv_temp = -1.0 / float(temperature)

    def kernel(v1_ref, v2_ref, common_ref, diff_ref):
        v1 = v1_ref[...]
        v2 = v2_ref[...]

        # abs-diff in the native dtype (bf16 input => half the VPU slots /
        # vreg pressure on v6e/v7x); everything downstream runs in f32.
        d = jnp.abs(v1 - v2).astype(jnp.float32)
        v1 = v1.astype(jnp.float32)

        logits = d * neg_inv_temp  # -|v1 - v2| / T, constant folded

        # Numerically stable softmax along the feature (lane) axis. Padded
        # lanes carry a huge |v1-v2| injected by the wrapper, so exp
        # underflows to exactly 0 there — no in-kernel masking needed.
        m = jnp.max(logits, axis=-1, keepdims=True)
        e = jnp.exp(logits - m)
        row_sum = jnp.sum(e, axis=-1, keepdims=True)

        # EUP approximate reciprocal + one Newton step (lane-sparse, ~free).
        inv_sum = pl.reciprocal(row_sum, approx=True)
        inv_sum = inv_sum * (2.0 - row_sum * inv_sum)
        w = e * inv_sum

        # Per-tile partial sums of the two loss terms.
        common_partial = jnp.sum(((w - 1.0) * v1) ** 2)
        diff_partial = jnp.sum(jnp.sum(e * d, axis=-1, keepdims=True) * inv_sum)

        # Lane-dense (1, 8, 128) writebacks; reduced outside the kernel.
        common_ref[...] = jnp.broadcast_to(common_partial, common_ref.shape)
        diff_ref[...] = jnp.broadcast_to(diff_partial, diff_ref.shape)

    return kernel


def softmax_threshold_loss(v1, v2, alpha=0.5, beta=0.5, temperature=1.0,
                           block_rows=None):
    """Returns (total_loss, common_loss, difference_loss) as f32 scalars."""
    assert v1.shape == v2.shape and v1.ndim == 2
    B, F = v1.shape

    # Lane-dense feature axis.
    f_pad = _round_up(F, 128)
    itemsize = int(jnp.dtype(v1.dtype).itemsize)

    # --- Generation-aware tile sizing -------------------------------------
    vmem_cap = _vmem_capacity_bytes()
    # Per-row VMEM: 2 inputs x 2 pipeline buffers (input dtype) plus ~5 full
    # f32 temporaries (d, logits, e, w, squared/weighted terms).
    per_row_bytes = f_pad * (4 * itemsize + 5 * 4)
    compute_budget = vmem_cap // 2
    max_rows = max(8, (compute_budget // per_row_bytes) // 8 * 8)
    # Target ~4 MiB input blocks to amortize the ~0.35 us per-step overhead.
    target_rows = max(8, ((4 << 20) // (f_pad * itemsize)) // 8 * 8)

    if block_rows is None:
        tile_b = min(target_rows, max_rows, _round_up(B, 8))
    else:
        tile_b = max(8, _round_up(int(block_rows), 8))
    b_pad = _round_up(B, tile_b)
    num_tiles = b_pad // tile_b

    # --- Padding (masking moved fully into the wrapper) -------------------
    if (b_pad, f_pad) != (B, F):
        pad = ((0, b_pad - B), (0, f_pad - F))
        v1 = jnp.pad(v1, pad)
        # Huge constant in the padded feature lanes of v2 => |v1-v2| huge =>
        # softmax weight is exactly 0 there; padded batch rows stay all-zero
        # in v1 so both loss terms get exactly 0 from every padded element.
        v2 = jnp.pad(v2, pad, constant_values=((0.0, 0.0), (0.0, _PAD_BIG)))

    # --- VMEM limit (capped well below physical on every generation) ------
    in_block_bytes = tile_b * f_pad * itemsize
    needed = (4 * in_block_bytes            # 2 inputs x 2 pipeline buffers
              + 5 * tile_b * f_pad * 4      # f32 temporaries
              + 4 * 8 * 128 * 4             # tiny double-buffered outputs
              + (2 << 20))                  # headroom
    vmem_limit = int(min(vmem_cap * 3 // 4, max(16 << 20, needed)))

    kernel = _make_loss_kernel(temperature)

    cost = pl.CostEstimate(
        flops=12 * b_pad * f_pad,
        transcendentals=b_pad * f_pad,
        bytes_accessed=2 * b_pad * f_pad * itemsize + 2 * num_tiles * 8 * 128 * 4,
    )

    part_shape = jax.ShapeDtypeStruct((num_tiles, 8, 128), jnp.float32)
    part_spec = pl.BlockSpec((1, 8, 128), lambda i: (i, 0, 0))

    common_parts, diff_parts = pl.pallas_call(
        kernel,
        out_shape=(part_shape, part_shape),
        grid=(num_tiles,),
        in_specs=[
            pl.BlockSpec((tile_b, f_pad), lambda i: (i, 0)),
            pl.BlockSpec((tile_b, f_pad), lambda i: (i, 0)),
        ],
        out_specs=(part_spec, part_spec),
        compiler_params=pltpu.CompilerParams(
            dimension_semantics=("parallel",),
            vmem_limit_bytes=vmem_limit,
        ),
        cost_estimate=cost,
    )(v1, v2)

    # Final reduction / mean / combine outside the kernel (tiny XLA ops).
    inv_b = jnp.float32(1.0 / B)
    common = jnp.sum(common_parts[:, 0, 0]) * inv_b
    diff = jnp.sum(diff_parts[:, 0, 0]) * inv_b
    total = jnp.float32(alpha) * common + jnp.float32(beta) * diff
    return total, common, diff


def _reference(v1, v2, alpha=0.5, beta=0.5, temperature=1.0):
    v1 = v1.astype(jnp.float32)
    v2 = v2.astype(jnp.float32)
    d = jnp.abs(v1 - v2)
    w = jax.nn.softmax(-d / temperature, axis=-1)
    common_loss = jnp.mean(jnp.sum((w * v1 - v1) ** 2, axis=1))
    diff_loss = jnp.mean(jnp.sum(w * d, axis=1))
    total = alpha * common_loss + beta * diff_loss
    return total, common_loss, diff_loss


if __name__ == "__main__":
    key = jax.random.PRNGKey(0)
    k1, k2 = jax.random.split(key)

    # Small shape consistent with the module: (batch x features).
    batch, features = 2, 32
    v1 = jax.random.normal(k1, (batch, features), dtype=jnp.float32)
    v2 = jax.random.normal(k2, (batch, features), dtype=jnp.float32)

    total, common, diff = softmax_threshold_loss(
        v1, v2, alpha=0.5, beta=0.5, temperature=1.0)
    jax.block_until_ready((total, common, diff))

    ref_total, ref_common, ref_diff = _reference(v1, v2)
    assert jnp.allclose(total, ref_total, atol=1e-4, rtol=1e-4), (total, ref_total)
    assert jnp.allclose(common, ref_common, atol=1e-4, rtol=1e-4), (common, ref_common)
    assert jnp.allclose(diff, ref_diff, atol=1e-4, rtol=1e-4), (diff, ref_diff)

    # Second check: ragged shapes (lane padding + multi-step batch grid,
    # exercising the wrapper-side masking and the outside partial reduction).
    k3, k4 = jax.random.split(k2)
    v1b = jax.random.normal(k3, (20, 200), dtype=jnp.float32)
    v2b = jax.random.normal(k4, (20, 200), dtype=jnp.float32)
    out_b = softmax_threshold_loss(v1b, v2b, alpha=0.3, beta=0.7,
                                   temperature=2.0, block_rows=8)
    jax.block_until_ready(out_b)
    ref_b = _reference(v1b, v2b, alpha=0.3, beta=0.7, temperature=2.0)
    for got, ref in zip(out_b, ref_b):
        assert jnp.allclose(got, ref, atol=1e-4, rtol=1e-4), (got, ref)

    print("KERNEL_OK")
</pallas_src>

<mosaic_0001>
module attributes {stable_mosaic.version = 11 : i64} {
  func.func @kernel(%arg0: i32, %arg1: memref<8x128xf32, #tpu.memory_space<vmem>>, %arg2: memref<8x128xf32, #tpu.memory_space<vmem>>, %arg3: memref<1x8x128xf32, #tpu.memory_space<vmem>>, %arg4: memref<1x8x128xf32, #tpu.memory_space<vmem>>) attributes {dimension_semantics = [#tpu.dimension_semantics<parallel>], iteration_bounds = array<i64: 1>, scalar_prefetch = 0 : i64, scratch_operands = 0 : i64, tpu.core_type = #tpu.core_type<tc>, window_params = [{transform_indices = @transform_0, window_bounds = array<i64: 8, 128>}, {transform_indices = @transform_1, window_bounds = array<i64: 8, 128>}, {transform_indices = @transform_2, window_bounds = array<i64: 1, 8, 128>}, {transform_indices = @transform_3, window_bounds = array<i64: 1, 8, 128>}]} {
    %c0 = arith.constant 0 : index
    %c0_0 = arith.constant 0 : index
    %0 = vector.load %arg1[%c0, %c0_0] : memref<8x128xf32, #tpu.memory_space<vmem>>, vector<8x128xf32>
    %c0_1 = arith.constant 0 : index
    %c0_2 = arith.constant 0 : index
    %1 = vector.load %arg2[%c0_1, %c0_2] : memref<8x128xf32, #tpu.memory_space<vmem>>, vector<8x128xf32>
    %2 = arith.subf %0, %1 : vector<8x128xf32>
    %3 = math.absf %2 : vector<8x128xf32>
    %cst = arith.constant -1.000000e+00 : f32
    %4 = vector.broadcast %cst : f32 to vector<8x128xf32>
    %5 = arith.mulf %3, %4 : vector<8x128xf32>
    %cst_3 = arith.constant dense<0xFF800000> : vector<8xf32>
    %6 = vector.multi_reduction <maximumf>, %5, %cst_3 [1] : vector<8x128xf32> to vector<8xf32>
    %7 = vector.shape_cast %6 : vector<8xf32> to vector<8x1xf32>
    %8 = vector.broadcast %7 : vector<8x1xf32> to vector<8x128xf32>
    %9 = arith.subf %5, %8 : vector<8x128xf32>
    %10 = math.exp %9 : vector<8x128xf32>
    %cst_4 = arith.constant dense<0.000000e+00> : vector<8xf32>
    %11 = vector.multi_reduction <add>, %10, %cst_4 [1] : vector<8x128xf32> to vector<8xf32>
    %12 = vector.shape_cast %11 : vector<8xf32> to vector<8x1xf32>
    %13 = tpu.reciprocal %12 {approx = true} : vector<8x1xf32> -> vector<8x1xf32>
    %14 = arith.mulf %12, %13 : vector<8x1xf32>
    %cst_5 = arith.constant 2.000000e+00 : f32
    %15 = vector.broadcast %cst_5 : f32 to vector<8x1xf32>
    %16 = arith.subf %15, %14 : vector<8x1xf32>
    %17 = arith.mulf %13, %16 : vector<8x1xf32>
    %18 = vector.broadcast %17 : vector<8x1xf32> to vector<8x128xf32>
    %19 = arith.mulf %10, %18 : vector<8x128xf32>
    %cst_6 = arith.constant 1.000000e+00 : f32
    %20 = vector.broadcast %cst_6 : f32 to vector<8x128xf32>
    %21 = arith.subf %19, %20 : vector<8x128xf32>
    %22 = arith.mulf %21, %0 : vector<8x128xf32>
    %23 = arith.mulf %22, %22 : vector<8x128xf32>
    %24 = vector.shape_cast %23 : vector<8x128xf32> to vector<1x8x128xf32>
    %cst_7 = arith.constant dense<0.000000e+00> : vector<1xf32>
    %25 = vector.multi_reduction <add>, %24, %cst_7 [1, 2] : vector<1x8x128xf32> to vector<1xf32>
    %26 = vector.shape_cast %25 : vector<1xf32> to vector<1x1x1xf32>
    %27 = vector.extract %26[0, 0, 0] : f32 from vector<1x1x1xf32>
    %28 = arith.mulf %10, %3 : vector<8x128xf32>
    %cst_8 = arith.constant dense<0.000000e+00> : vector<8xf32>
    %29 = vector.multi_reduction <add>, %28, %cst_8 [1] : vector<8x128xf32> to vector<8xf32>
    %30 = vector.shape_cast %29 : vector<8xf32> to vector<8x1xf32>
    %31 = arith.mulf %30, %17 : vector<8x1xf32>
    %32 = vector.shape_cast %31 : vector<8x1xf32> to vector<1x8x1xf32>
    %cst_9 = arith.constant dense<0.000000e+00> : vector<1xf32>
    %33 = vector.multi_reduction <add>, %32, %cst_9 [1, 2] : vector<1x8x1xf32> to vector<1xf32>
    %34 = vector.shape_cast %33 : vector<1xf32> to vector<1x1x1xf32>
    %35 = vector.extract %34[0, 0, 0] : f32 from vector<1x1x1xf32>
    %36 = vector.broadcast %27 : f32 to vector<1x8x128xf32>
    %c0_10 = arith.constant 0 : index
    %c0_11 = arith.constant 0 : index
    %c0_12 = arith.constant 0 : index
    %37 = vector.load %arg3[%c0_10, %c0_11, %c0_12] : memref<1x8x128xf32, #tpu.memory_space<vmem>>, vector<1x8x128xf32>
    tpu.vector_store %arg3[%c0_10, %c0_11, %c0_12], %36 {strides = array<i32>} : memref<1x8x128xf32, #tpu.memory_space<vmem>>, vector<1x8x128xf32>,
    %38 = vector.broadcast %35 : f32 to vector<1x8x128xf32>
    %c0_13 = arith.constant 0 : index
    %c0_14 = arith.constant 0 : index
    %c0_15 = arith.constant 0 : index
    %39 = vector.load %arg4[%c0_13, %c0_14, %c0_15] : memref<1x8x128xf32, #tpu.memory_space<vmem>>, vector<1x8x128xf32>
    tpu.vector_store %arg4[%c0_13, %c0_14, %c0_15], %38 {strides = array<i32>} : memref<1x8x128xf32, #tpu.memory_space<vmem>>, vector<1x8x128xf32>,
    return
  }
  func.func @transform_0(%arg0: i32) -> (i32, i32) {
    %c0_i32 = arith.constant 0 : i32
    %c0_i32_0 = arith.constant 0 : i32
    return %arg0, %c0_i32 : i32, i32
  }
  func.func @transform_1(%arg0: i32) -> (i32, i32) {
    %c0_i32 = arith.constant 0 : i32
    %c0_i32_0 = arith.constant 0 : i32
    return %arg0, %c0_i32 : i32, i32
  }
  func.func @transform_2(%arg0: i32) -> (i32, i32, i32) {
    %c0_i32 = arith.constant 0 : i32
    %c0_i32_0 = arith.constant 0 : i32
    %c0_i32_1 = arith.constant 0 : i32
    return %arg0, %c0_i32, %c0_i32_0 : i32, i32, i32
  }
  func.func @transform_3(%arg0: i32) -> (i32, i32, i32) {
    %c0_i32 = arith.constant 0 : i32
    %c0_i32_0 = arith.constant 0 : i32
    %c0_i32_1 = arith.constant 0 : i32
    return %arg0, %c0_i32, %c0_i32_0 : i32, i32, i32
  }
}

</mosaic_0001>

<llo_original>
// kernel: tpu_custom_call.1
$region0: #{tpu_custom_call.1}
  #allocation0 [shape = 'u32[]', space=smem, size = 0x4, offset = 0x4, fixed_abs, tag = 'smem constant byte address 0x4 - core index']
  #allocation1 [shape = 'u32[144,128]{1,0:T(1,128)}', space=vmem, size = 0x12000, scoped, tag = 'internal scratch']
  %s0 = inlined_call_operand.hbm [shape: f32[8,128], index: 0, kind: input, shape index: {}]
  %s1 = inlined_call_operand.hbm [shape: f32[8,128], index: 1, kind: input, shape index: {}]
  %s2 = inlined_call_operand.hbm [shape: f32[1,8,128], index: 2, kind: output, shape index: {0}]
  %s3 = inlined_call_operand.hbm [shape: f32[1,8,128], index: 3, kind: output, shape index: {1}]
  %4 = xla_tuple %s2, %s3
  %s5 = sld [smem:[#allocation0]]
  $region34: #{tpu_custom_call.1} parent=0
    _
  %s7 = ssub.s32 1, %s5
  %s8 = scalar_select 0, %s7, %s5
  $region1: #{tpu_custom_call.1} parent=0
    #allocation2 [shape = 'u8[4096]{0}', space=vmem, size = 0x1000, scoped, tag = 'input window, operand 0, single buffered']
    #allocation3 [shape = 's32[1]{0}', space=sflag, size = 0x4, scoped, tag = 'scoped memory for tpu_custom_call.1']
    #allocation4 [shape = 's32[1]{0}', space=sflag, size = 0x4, scoped, tag = 'scoped memory for tpu_custom_call.1']
    #allocation5 [shape = 'u8[4096]{0}', space=vmem, size = 0x1000, scoped, tag = 'input window, operand 1, single buffered']
    #allocation6 [shape = 's32[1]{0}', space=sflag, size = 0x4, scoped, tag = 'scoped memory for tpu_custom_call.1']
    #allocation7 [shape = 'u8[4096]{0}', space=vmem, size = 0x1000, scoped, tag = 'output window, operand 0, single buffered']
    #allocation8 [shape = 'u8[4096]{0}', space=vmem, size = 0x1000, scoped, tag = 'output window, operand 1, single buffered']
    #allocation9 [shape = 's32[1]{0}', space=sflag, size = 0x4, scoped, tag = 'scoped memory for tpu_custom_call.1']
    %9 = vsyncpa [#allocation3], 0
    %10 = vsyncpa [#allocation6], 0
    %11 = vsyncpa [#allocation4], 0
    %12 = vsyncpa [#allocation9], 0
    // Predicated region
    $region2: #{tpu_custom_call.1} parent=1 // pred_check
      _
    $region3: #{tpu_custom_call.1} parent=1 // pred_check_branch
      %14 = sbr.rel (0) target = $region5
    $region4: #{tpu_custom_call.1} parent=1 // pred_region
      %s16 = ssub.s32 128, 128
      %17 = vsyncadd [#allocation3], %s16
      %s19 = sshll.u32 [#allocation2], 4
      %s20 = int_to_ptr.vmem [resolvable:$true] %s19
      %22 = dma.hbm_to_vmem [thread:$0]  %s0, 128, %s20, [#allocation3]
    $region5: #{tpu_custom_call.1} parent=1 // pred_fallthru
      _
    // Predicated region
    $region6: #{tpu_custom_call.1} parent=1 // pred_check
      _
    $region7: #{tpu_custom_call.1} parent=1 // pred_check_branch
      %24 = sbr.rel (0) target = $region9
    $region8: #{tpu_custom_call.1} parent=1 // pred_region
      %s26 = ssub.s32 128, 128
      %27 = vsyncadd [#allocation6], %s26
      %s29 = sshll.u32 [#allocation5], 4
      %s30 = int_to_ptr.vmem [resolvable:$true] %s29
      %32 = dma.hbm_to_vmem [thread:$0]  %s1, 128, %s30, [#allocation6]
    $region9: #{tpu_custom_call.1} parent=1 // pred_fallthru
      _
    // Predicated region
    $region10: #{tpu_custom_call.1} parent=1 // pred_check
      _
    $region11: #{tpu_custom_call.1} parent=1 // pred_check_branch
      %34 = sbr.rel (0) target = $region13
    $region12: #{tpu_custom_call.1} parent=1 // pred_region
      %35 = dma.done [#allocation3], 128
    $region13: #{tpu_custom_call.1} parent=1 // pred_fallthru
      _
    // Predicated region
    $region14: #{tpu_custom_call.1} parent=1 // pred_check
      _
    $region15: #{tpu_custom_call.1} parent=1 // pred_check_branch
      %37 = sbr.rel (0) target = $region17
    $region16: #{tpu_custom_call.1} parent=1 // pred_region
      %38 = dma.done [#allocation6], 128
    $region17: #{tpu_custom_call.1} parent=1 // pred_fallthru
      _
    %v39 = vld [vmem:[#allocation2] sm:$0xff]
    %v40 = vld [vmem:[#allocation5] sm:$0xff]
    %v41 = vsub.f32 %v39, %v40
    %v42 = vand.u32 2147483647, %v41
    %v43 = vmul.f32 %v42, -1.0
    %44 = vmax.xlane.f32.xlu0 %v43
    %v45 = vpop.xlane.xlu0 %44
    %v46 = vsub.f32 %v43, %v45
    %v47 = vmul.f32 %v46, 1.442695
    %v48 = vpow.pop %v47
    %49 = vadd.xlane.f32.xlu0 %v48
    %v50 = vpop.xlane.xlu0 %49
    %v51 = vrcp.pop %v50
    %v52 = vmul.f32 %v50, %v51
    %v53 = vsub.f32 2.0, %v52
    %v54 = vmul.f32 %v51, %v53
    %v55 = vmul.f32 %v48, %v54
    %v56 = vsub.f32 %v55, 1.0
    %v57 = vmul.f32 %v56, %v39
    %v58 = vmul.f32 %v57, %v57
    %59 = vadd.xlane.f32.xlu0 %v58
    %v60 = vpop.xlane.xlu0 %59
    %v61 = vrot.slane %v60, 4
    %v62 = vadd.f32 %v60, %v61
    %v63 = vrot.slane %v62, 2
    %v64 = vadd.f32 %v62, %v63
    %v65 = vrot.slane %v64, 1
    %v66 = vadd.f32 %v64, %v65
    %s67 = vtos %v66
    %v68 = vmul.f32 %v48, %v42
    %69 = vadd.xlane.f32.xlu0 %v68
    %v70 = vpop.xlane.xlu0 %69
    %v71 = vmul.f32 %v70, %v54
    %vm72 = vcmask 7168
    %v73 = vsel %vm72, %v71, 0.0
    %74 = vadd.xlane.f32.xlu0 %v73
    %v75 = vpop.xlane.xlu0 %74
    %v76 = vrot.slane %v75, 4
    %v77 = vadd.f32 %v75, %v76
    %v78 = vrot.slane %v77, 2
    %v79 = vadd.f32 %v77, %v78
    %v80 = vrot.slane %v79, 1
    %v81 = vadd.f32 %v79, %v80
    %s82 = vtos %v81
    %v83 = vstv %s67
    %84 = vst [vmem:[#allocation7] sm:$0xff] %v83
    %v85 = vstv %s82
    %86 = vst [vmem:[#allocation8] sm:$0xff] %v85
    // Predicated region
    $region18: #{tpu_custom_call.1} parent=1 // pred_check
      _
    $region19: #{tpu_custom_call.1} parent=1 // pred_check_branch
      %88 = sbr.rel (0) target = $region21
    $region20: #{tpu_custom_call.1} parent=1 // pred_region
      %s90 = ssub.s32 128, 128
      %91 = vsyncadd [#allocation4], %s90
      %s93 = sshll.u32 [#allocation7], 4
      %s94 = int_to_ptr.vmem [resolvable:$true] %s93
      %96 = dma.vmem_to_hbm [thread:$0]  %s94, 128, %s2, [#allocation4]
    $region21: #{tpu_custom_call.1} parent=1 // pred_fallthru
      _
    // Predicated region
    $region22: #{tpu_custom_call.1} parent=1 // pred_check
      _
    $region23: #{tpu_custom_call.1} parent=1 // pred_check_branch
      %98 = sbr.rel (0) target = $region25
    $region24: #{tpu_custom_call.1} parent=1 // pred_region
      %s100 = ssub.s32 128, 128
      %101 = vsyncadd [#allocation9], %s100
      %s103 = sshll.u32 [#allocation8], 4
      %s104 = int_to_ptr.vmem [resolvable:$true] %s103
      %106 = dma.vmem_to_hbm [thread:$0]  %s104, 128, %s3, [#allocation9]
    $region25: #{tpu_custom_call.1} parent=1 // pred_fallthru
      _
    // Predicated region
    $region26: #{tpu_custom_call.1} parent=1 // pred_check
      _
    $region27: #{tpu_custom_call.1} parent=1 // pred_check_branch
      %108 = sbr.rel (0) target = $region29
    $region28: #{tpu_custom_call.1} parent=1 // pred_region
      %109 = dma.done [#allocation4], 128
    $region29: #{tpu_custom_call.1} parent=1 // pred_fallthru
      _
    // Predicated region
    $region30: #{tpu_custom_call.1} parent=1 // pred_check
      _
    $region31: #{tpu_custom_call.1} parent=1 // pred_check_branch
      %111 = sbr.rel (0) target = $region33
    $region32: #{tpu_custom_call.1} parent=1 // pred_region
      %112 = dma.done [#allocation9], 128
    $region33: #{tpu_custom_call.1} parent=1 // pred_fallthru
      _
    %113 = vsyncpa [#allocation3], 1
    %114 = vsyncpa [#allocation6], 1
    %115 = vsyncpa [#allocation4], 1
    %116 = vsyncpa [#allocation9], 1

</llo_original>
